<compile_context>
chip_gen: v7x
topology: tpu7x:2x2x1
jax: 0.10.0
libtpu: 0.0.40
codegen_flags: <defaults>
</compile_context>

<pallas_src>
import functools

import jax
import jax.numpy as jnp
from jax.experimental import pallas as pl
from jax.experimental.pallas import tpu as pltpu


_LANES = 512        # lane-dense last dim (multiple of 128)
_ROW_ALIGN = 32     # keeps bf16 (16,128) / int8 (32,128) native tiles aligned


def _tpu_flags():
    """Best-effort, static TPU generation detection (import time)."""
    try:
        kind = jax.devices()[0].device_kind.lower()
    except Exception:
        kind = ""
    digits = [int(c) for c in kind if c.isdigit()]
    gen = digits[0] if digits else 6
    megacore = (gen == 4) or (gen >= 7) or ("v5p" in kind)
    return gen, megacore


_TPU_GEN, _MEGACORE = _tpu_flags()
# v7x: per-step overhead is relatively larger vs 3.2 TB/s HBM -> bigger tiles.
_MAX_TILE_ROWS = 1024 if _TPU_GEN >= 7 else 512
# Two independent partial sums only where a second TensorCore can use them.
_NUM_PARTIALS = 2 if _MEGACORE else 1
# Approx reciprocal only on v7x (rel. err ~2^-12); divide is HBM-hidden elsewhere.
_USE_APPROX_RECIP = _TPU_GEN >= 7


def _round_up(x: int, m: int) -> int:
    return ((x + m - 1) // m) * m


def _laplace_loss_kernel(mus_ref, bs_ref, tgt_ref, out_ref, acc_ref, *,
                         approx_recip: bool):
    """Streams (TR, LANES) tiles; accumulates an elementwise partial sum.

    Grid = (P, G): P independent partial sums ("parallel"), G row tiles per
    partial (the "arbitrary" reduction axis, last).
    """
    g = pl.program_id(1)
    ng = pl.num_programs(1)

    @pl.when(g == 0)
    def _():
        acc_ref[...] = jnp.zeros_like(acc_ref)

    mu = mus_ref[...].astype(jnp.float32)
    b = bs_ref[...].astype(jnp.float32)
    t = tgt_ref[...].astype(jnp.float32)

    # exp(-log b) * |t - mu| + log b  ==  |t - mu| / b + log b
    absdiff = jnp.abs(t - mu)
    if approx_recip:
        term = absdiff * pl.reciprocal(b, approx=True)
    else:
        term = absdiff / b
    acc_ref[...] += term + jnp.log(b)

    @pl.when(g == ng - 1)
    def _():
        out_ref[...] = jnp.full(out_ref.shape, jnp.sum(acc_ref[...]),
                                dtype=out_ref.dtype)


@jax.jit
def laplace_loss(outputs: jax.Array, targets: jax.Array) -> jax.Array:
    """outputs: (..., N, 2), targets: (..., N) -> scalar mean Laplace NLL."""
    n = targets.shape[-1]
    outputs = outputs.reshape(-1, n, 2)
    targets = targets.reshape(-1, n)
    total = targets.size

    # Tiling: lane-dense 2D layout; padding values (mu=0, b=1, t=0) contribute
    # exactly 0 to the sum, and the mean divides by the TRUE element count.
    rows = pl.cdiv(total, _LANES)
    tile_rows = min(_MAX_TILE_ROWS,
                    _round_up(pl.cdiv(rows, _NUM_PARTIALS), _ROW_ALIGN))
    tiles_per_partial = pl.cdiv(rows, _NUM_PARTIALS * tile_rows)
    padded_rows = _NUM_PARTIALS * tiles_per_partial * tile_rows
    pad = padded_rows * _LANES - total

    # De-interleave mu / b with the padding FUSED into the slice: one
    # slice+pad fusion per stream (single read of outputs/targets, single
    # write of each padded operand) instead of slice-copy + concatenate-copy.
    # dtype preserved; the f32 cast happens per-tile inside the kernel.
    mus = outputs[..., 0].reshape(-1)
    bs = outputs[..., 1].reshape(-1)
    tgt = targets.reshape(-1)
    if pad:
        mus = jnp.pad(mus, (0, pad))
        bs = jnp.pad(bs, (0, pad), constant_values=1)
        tgt = jnp.pad(tgt, (0, pad))

    mus2d = mus.reshape(padded_rows, _LANES)
    bs2d = bs.reshape(padded_rows, _LANES)
    tgt2d = tgt.reshape(padded_rows, _LANES)

    g = tiles_per_partial
    in_spec = pl.BlockSpec((tile_rows, _LANES), lambda p, i: (p * g + i, 0))

    n_padded = padded_rows * _LANES
    item_o = jnp.dtype(outputs.dtype).itemsize
    item_t = jnp.dtype(targets.dtype).itemsize
    cost = pl.CostEstimate(
        flops=5 * n_padded,
        transcendentals=(2 if _USE_APPROX_RECIP else 1) * n_padded,
        bytes_accessed=n_padded * (2 * item_o + item_t)
        + _NUM_PARTIALS * 8 * 128 * 4,
    )

    kernel = functools.partial(_laplace_loss_kernel,
                               approx_recip=_USE_APPROX_RECIP)

    partials = pl.pallas_call(
        kernel,
        out_shape=jax.ShapeDtypeStruct((_NUM_PARTIALS, 8, 128), jnp.float32),
        grid_spec=pltpu.PrefetchScalarGridSpec(
            num_scalar_prefetch=0,
            grid=(_NUM_PARTIALS, tiles_per_partial),
            in_specs=[in_spec, in_spec, in_spec],
            out_specs=pl.BlockSpec((1, 8, 128), lambda p, i: (p, 0, 0)),
            scratch_shapes=[pltpu.VMEM((tile_rows, _LANES), jnp.float32)],
        ),
        compiler_params=pltpu.CompilerParams(
            dimension_semantics=("parallel", "arbitrary")),
        cost_estimate=cost,
    )(mus2d, bs2d, tgt2d)

    # Tiny final combine of the per-core partial sums; mean over the TRUE
    # element count (padding contributed exactly zero).
    return jnp.sum(partials[:, 0, 0]) / jnp.float32(total)


if __name__ == "__main__":
    key = jax.random.PRNGKey(0)
    k_mu, k_b, k_t = jax.random.split(key, 3)

    B, N = 2, 128  # batch_num, samples_num

    mu = jax.random.normal(k_mu, (B, N), dtype=jnp.float32)
    # scale parameter b must be positive for log(b)
    b = jnp.exp(jax.random.normal(k_b, (B, N), dtype=jnp.float32) * 0.3)
    outputs = jnp.stack([mu, b], axis=-1)            # (B, N, 2)
    targets = jax.random.normal(k_t, (B, N), dtype=jnp.float32)

    loss = jax.block_until_ready(laplace_loss(outputs, targets))

    # Reference check (pure JAX, exact PyTorch formula incl. exp(-log b)).
    s_ref = jnp.log(b)
    ref = jnp.mean(jnp.exp(-s_ref) * jnp.abs(targets - mu) + s_ref)
    # Wider tolerance only when the v7x approx-reciprocal path is active.
    tol = 2e-3 if _USE_APPROX_RECIP else 1e-4
    assert jnp.allclose(loss, ref, rtol=tol, atol=tol), (loss, ref)

    print("KERNEL_OK")
</pallas_src>

<mosaic_0001>
module attributes {stable_mosaic.version = 11 : i64} {
  func.func @_laplace_loss_kernel(%arg0: i32, %arg1: i32, %arg2: memref<32x512xf32, #tpu.memory_space<vmem>>, %arg3: memref<32x512xf32, #tpu.memory_space<vmem>>, %arg4: memref<32x512xf32, #tpu.memory_space<vmem>>, %arg5: memref<1x8x128xf32, #tpu.memory_space<vmem>>, %arg6: memref<32x512xf32, #tpu.memory_space<vmem>>) attributes {dimension_semantics = [#tpu.dimension_semantics<parallel>, #tpu.dimension_semantics<arbitrary>], iteration_bounds = array<i64: 1, 1>, scalar_prefetch = 0 : i64, scratch_operands = 1 : i64, tpu.core_type = #tpu.core_type<tc>, window_params = [{transform_indices = @transform_0, window_bounds = array<i64: 32, 512>}, {transform_indices = @transform_1, window_bounds = array<i64: 32, 512>}, {transform_indices = @transform_2, window_bounds = array<i64: 32, 512>}, {transform_indices = @transform_3, window_bounds = array<i64: 1, 8, 128>}]} {
    %c0_i32 = arith.constant 0 : i32
    %0 = arith.cmpi eq, %arg1, %c0_i32 : i32
    %1 = arith.extui %0 : i1 to i32
    %c0_i32_0 = arith.constant 0 : i32
    %2 = arith.cmpi ne, %1, %c0_i32_0 : i32
    scf.if %2 {
      %cst = arith.constant 0.000000e+00 : f32
      %17 = vector.broadcast %cst : f32 to vector<32x512xf32>
      %c0_12 = arith.constant 0 : index
      %c0_13 = arith.constant 0 : index
      %18 = vector.load %arg6[%c0_12, %c0_13] : memref<32x512xf32, #tpu.memory_space<vmem>>, vector<32x512xf32>
      tpu.vector_store %arg6[%c0_12, %c0_13], %17 {strides = array<i32>} : memref<32x512xf32, #tpu.memory_space<vmem>>, vector<32x512xf32>,
    } else {
    }
    %c0 = arith.constant 0 : index
    %c0_1 = arith.constant 0 : index
    %3 = vector.load %arg2[%c0, %c0_1] : memref<32x512xf32, #tpu.memory_space<vmem>>, vector<32x512xf32>
    %c0_2 = arith.constant 0 : index
    %c0_3 = arith.constant 0 : index
    %4 = vector.load %arg3[%c0_2, %c0_3] : memref<32x512xf32, #tpu.memory_space<vmem>>, vector<32x512xf32>
    %c0_4 = arith.constant 0 : index
    %c0_5 = arith.constant 0 : index
    %5 = vector.load %arg4[%c0_4, %c0_5] : memref<32x512xf32, #tpu.memory_space<vmem>>, vector<32x512xf32>
    %6 = arith.subf %5, %3 : vector<32x512xf32>
    %7 = math.absf %6 : vector<32x512xf32>
    %8 = arith.divf %7, %4 : vector<32x512xf32>
    %c0_6 = arith.constant 0 : index
    %c0_7 = arith.constant 0 : index
    %9 = vector.load %arg6[%c0_6, %c0_7] : memref<32x512xf32, #tpu.memory_space<vmem>>, vector<32x512xf32>
    %10 = math.log %4 : vector<32x512xf32>
    %11 = arith.addf %8, %10 : vector<32x512xf32>
    %12 = arith.addf %9, %11 : vector<32x512xf32>
    %c0_8 = arith.constant 0 : index
    %c0_9 = arith.constant 0 : index
    %13 = vector.load %arg6[%c0_8, %c0_9] : memref<32x512xf32, #tpu.memory_space<vmem>>, vector<32x512xf32>
    tpu.vector_store %arg6[%c0_8, %c0_9], %12 {strides = array<i32>} : memref<32x512xf32, #tpu.memory_space<vmem>>, vector<32x512xf32>,
    %c0_i32_10 = arith.constant 0 : i32
    %14 = arith.cmpi eq, %arg1, %c0_i32_10 : i32
    %15 = arith.extui %14 : i1 to i32
    %c0_i32_11 = arith.constant 0 : i32
    %16 = arith.cmpi ne, %15, %c0_i32_11 : i32
    scf.if %16 {
      %c0_12 = arith.constant 0 : index
      %c0_13 = arith.constant 0 : index
      %17 = vector.load %arg6[%c0_12, %c0_13] : memref<32x512xf32, #tpu.memory_space<vmem>>, vector<32x512xf32>
      %18 = vector.shape_cast %17 : vector<32x512xf32> to vector<1x32x512xf32>
      %cst = arith.constant dense<0.000000e+00> : vector<1xf32>
      %19 = vector.multi_reduction <add>, %18, %cst [1, 2] : vector<1x32x512xf32> to vector<1xf32>
      %20 = vector.shape_cast %19 : vector<1xf32> to vector<1x1x1xf32>
      %21 = vector.extract %20[0, 0, 0] : f32 from vector<1x1x1xf32>
      %22 = vector.broadcast %21 : f32 to vector<1x8x128xf32>
      %c0_14 = arith.constant 0 : index
      %c0_15 = arith.constant 0 : index
      %c0_16 = arith.constant 0 : index
      %23 = vector.load %arg5[%c0_14, %c0_15, %c0_16] : memref<1x8x128xf32, #tpu.memory_space<vmem>>, vector<1x8x128xf32>
      tpu.vector_store %arg5[%c0_14, %c0_15, %c0_16], %22 {strides = array<i32>} : memref<1x8x128xf32, #tpu.memory_space<vmem>>, vector<1x8x128xf32>,
    } else {
    }
    return
  }
  func.func @transform_0(%arg0: i32, %arg1: i32) -> (i32, i32) {
    %c1_i32 = arith.constant 1 : i32
    %0 = arith.muli %arg0, %c1_i32 : i32
    %1 = arith.addi %0, %arg1 : i32
    %c0_i32 = arith.constant 0 : i32
    %c0_i32_0 = arith.constant 0 : i32
    return %1, %c0_i32 : i32, i32
  }
  func.func @transform_1(%arg0: i32, %arg1: i32) -> (i32, i32) {
    %c1_i32 = arith.constant 1 : i32
    %0 = arith.muli %arg0, %c1_i32 : i32
    %1 = arith.addi %0, %arg1 : i32
    %c0_i32 = arith.constant 0 : i32
    %c0_i32_0 = arith.constant 0 : i32
    return %1, %c0_i32 : i32, i32
  }
  func.func @transform_2(%arg0: i32, %arg1: i32) -> (i32, i32) {
    %c1_i32 = arith.constant 1 : i32
    %0 = arith.muli %arg0, %c1_i32 : i32
    %1 = arith.addi %0, %arg1 : i32
    %c0_i32 = arith.constant 0 : i32
    %c0_i32_0 = arith.constant 0 : i32
    return %1, %c0_i32 : i32, i32
  }
  func.func @transform_3(%arg0: i32, %arg1: i32) -> (i32, i32, i32) {
    %c0_i32 = arith.constant 0 : i32
    %c0_i32_0 = arith.constant 0 : i32
    %c0_i32_1 = arith.constant 0 : i32
    return %arg0, %c0_i32, %c0_i32_0 : i32, i32, i32
  }
}

</mosaic_0001>

<llo_original>
// kernel: laplace_loss.1
$region0: #{laplace_loss.1}
  #allocation0 [shape = 'u32[]', space=smem, size = 0x4, offset = 0x4, fixed_abs, tag = 'smem constant byte address 0x4 - core index']
  #allocation1 [shape = 'u32[144,128]{1,0:T(1,128)}', space=vmem, size = 0x12000, scoped, tag = 'internal scratch']
  #allocation2 [shape = 'f32[32,512]{1,0:T(8,128)}', space=vmem, size = 0x10000, scoped, tag = 'scratch operand']
  %s0 = inlined_call_operand.vmem [shape: f32[32,512], index: 0, kind: input, shape index: {}]
  %s1 = inlined_call_operand.vmem [shape: f32[32,512], index: 1, kind: input, shape index: {}]
  %s2 = inlined_call_operand.vmem [shape: f32[32,512], index: 2, kind: input, shape index: {}]
  %s3 = inlined_call_operand.vmem [shape: f32[1,8,128], index: 3, kind: output, shape index: {}]
  %s4 = sld [smem:[#allocation0]]
  $region30: #{laplace_loss.1} parent=0
    _
  %s6 = ssub.s32 1, %s4
  %s7 = scalar_select 0, %s6, %s4
  // Predicated region
  $region2: #{laplace_loss.1} parent=0 // pred_check
    _
  $region3: #{laplace_loss.1} parent=0 // pred_check_branch
    %9 = sbr.rel (0) target = $region5
  $region4: #{laplace_loss.1} parent=0 // pred_region
    %s10 = sadd.s32 0, 0
    %s11 = smul.u32 4, %s10
    %p12 = scmp.lt.s32.totalorder %s11, 3
    %s13 = scalar_select %p12, %s11, 3
    %s14 = smul.addr %s13, 4
    %s15 = smul.addr %s14, 8
    %s16 = scalar_lea.vmem %s0, %s15
    %s17 = sadd.s32 0, 0
    %s18 = smul.u32 4, %s17
  $region5: #{laplace_loss.1} parent=0 // pred_fallthru
    _
  // Predicated region
  $region6: #{laplace_loss.1} parent=0 // pred_check
    _
  $region7: #{laplace_loss.1} parent=0 // pred_check_branch
    %20 = sbr.rel (0) target = $region9
  $region8: #{laplace_loss.1} parent=0 // pred_region
    %s21 = sadd.s32 0, 0
    %s22 = smul.u32 4, %s21
    %p23 = scmp.lt.s32.totalorder %s22, 3
    %s24 = scalar_select %p23, %s22, 3
    %s25 = smul.addr %s24, 4
    %s26 = smul.addr %s25, 8
    %s27 = scalar_lea.vmem %s1, %s26
    %s28 = sadd.s32 0, 0
    %s29 = smul.u32 4, %s28
  $region9: #{laplace_loss.1} parent=0 // pred_fallthru
    _
  // Predicated region
  $region10: #{laplace_loss.1} parent=0 // pred_check
    _
  $region11: #{laplace_loss.1} parent=0 // pred_check_branch
    %31 = sbr.rel (0) target = $region13
  $region12: #{laplace_loss.1} parent=0 // pred_region
    %s32 = sadd.s32 0, 0
    %s33 = smul.u32 4, %s32
    %p34 = scmp.lt.s32.totalorder %s33, 3
    %s35 = scalar_select %p34, %s33, 3
    %s36 = smul.addr %s35, 4
    %s37 = smul.addr %s36, 8
    %s38 = scalar_lea.vmem %s2, %s37
    %s39 = sadd.s32 0, 0
    %s40 = smul.u32 4, %s39
  $region13: #{laplace_loss.1} parent=0 // pred_fallthru
    _
  %s41 = sadd.s32 0, 0
  %s42 = smul.u32 4, %s41
  %p43 = scmp.lt.s32.totalorder %s42, 3
  %s44 = scalar_select %p43, %s42, 3
  %s45 = smul.addr %s44, 4
  %s46 = smul.addr %s45, 8
  %s47 = scalar_lea.vmem %s0, %s46
  %s48 = sadd.s32 0, 0
  %s49 = smul.u32 4, %s48
  %p50 = scmp.lt.s32.totalorder %s49, 3
  %s51 = scalar_select %p50, %s49, 3
  %s52 = smul.addr %s51, 4
  %s53 = smul.addr %s52, 8
  %s54 = scalar_lea.vmem %s1, %s53
  %s55 = sadd.s32 0, 0
  %s56 = smul.u32 4, %s55
  %p57 = scmp.lt.s32.totalorder %s56, 3
  %s58 = scalar_select %p57, %s56, 3
  %s59 = smul.addr %s58, 4
  %s60 = smul.addr %s59, 8
  %s61 = scalar_lea.vmem %s2, %s60
  %s62 = sadd.s32 0, 0
  %s63 = smul.u32 4, %s62
  %p64 = scmp.lt.s32.totalorder %s63, 3
  %s65 = scalar_select %p64, %s63, 3
  %s66 = smul.addr %s65, 4
  %s67 = smul.addr %s66, 8
  %s68 = scalar_lea.vmem %s0, %s67
  %s69 = sadd.s32 0, 0
  %s70 = smul.u32 4, %s69
  %s71 = sadd.s32 0, 0
  %s72 = smul.u32 4, %s71
  %p73 = scmp.lt.s32.totalorder %s72, 3
  %s74 = scalar_select %p73, %s72, 3
  %s75 = smul.addr %s74, 4
  %s76 = smul.addr %s75, 8
  %s77 = scalar_lea.vmem %s1, %s76
  %s78 = sadd.s32 0, 0
  %s79 = smul.u32 4, %s78
  %s80 = sadd.s32 0, 0
  %s81 = smul.u32 4, %s80
  %p82 = scmp.lt.s32.totalorder %s81, 3
  %s83 = scalar_select %p82, %s81, 3
  %s84 = smul.addr %s83, 4
  %s85 = smul.addr %s84, 8
  %s86 = scalar_lea.vmem %s2, %s85
  %s87 = sadd.s32 0, 0
  %s88 = smul.u32 4, %s87
  %p89 = scmp.eq.s32.totalorder 0, 0
  // Predicated region
  $region14: #{laplace_loss.1} parent=0 // pred_check
    %p90 = pneg %p89
  $region15: #{laplace_loss.1} parent=0 // pred_check_branch
    %92 = sbr.rel (%p90) target = $region17
  $region16: #{laplace_loss.1} parent=0 // pred_region
    %93 = vst [vmem:[#allocation2] sm:$0xff] 0.0
    %94 = vst [vmem:[#allocation2 + $0x8] sm:$0xff] 0.0
    %95 = vst [vmem:[#allocation2 + $0x10] sm:$0xff] 0.0
    %96 = vst [vmem:[#allocation2 + $0x18] sm:$0xff] 0.0
    %97 = vst [vmem:[#allocation2 + $0x20] sm:$0xff] 0.0
    %98 = vst [vmem:[#allocation2 + $0x28] sm:$0xff] 0.0
    %99 = vst [vmem:[#allocation2 + $0x30] sm:$0xff] 0.0
    %100 = vst [vmem:[#allocation2 + $0x38] sm:$0xff] 0.0
    %101 = vst [vmem:[#allocation2 + $0x40] sm:$0xff] 0.0
    %102 = vst [vmem:[#allocation2 + $0x48] sm:$0xff] 0.0
    %103 = vst [vmem:[#allocation2 + $0x50] sm:$0xff] 0.0
    %104 = vst [vmem:[#allocation2 + $0x58] sm:$0xff] 0.0
    %105 = vst [vmem:[#allocation2 + $0x60] sm:$0xff] 0.0
    %106 = vst [vmem:[#allocation2 + $0x68] sm:$0xff] 0.0
    %107 = vst [vmem:[#allocation2 + $0x70] sm:$0xff] 0.0
    %108 = vst [vmem:[#allocation2 + $0x78] sm:$0xff] 0.0
  $region17: #{laplace_loss.1} parent=0 // pred_fallthru
    _
  %v109 = vld [vmem:[%s68] sm:$0xff]
  %v110 = vld [vmem:[%s68 + $0x8] sm:$0xff]
  %v111 = vld [vmem:[%s68 + $0x10] sm:$0xff]
  %v112 = vld [vmem:[%s68 + $0x18] sm:$0xff]
  %v113 = vld [vmem:[%s68 + $0x20] sm:$0xff]
  %v114 = vld [vmem:[%s68 + $0x28] sm:$0xff]
  %v115 = vld [vmem:[%s68 + $0x30] sm:$0xff]
  %v116 = vld [vmem:[%s68 + $0x38] sm:$0xff]
  %v117 = vld [vmem:[%s68 + $0x40] sm:$0xff]
  %v118 = vld [vmem:[%s68 + $0x48] sm:$0xff]
  %v119 = vld [vmem:[%s68 + $0x50] sm:$0xff]
  %v120 = vld [vmem:[%s68 + $0x58] sm:$0xff]
  %v121 = vld [vmem:[%s68 + $0x60] sm:$0xff]
  %v122 = vld [vmem:[%s68 + $0x68] sm:$0xff]
  %v123 = vld [vmem:[%s68 + $0x70] sm:$0xff]
  %v124 = vld [vmem:[%s68 + $0x78] sm:$0xff]
  %v125 = vld [vmem:[%s77] sm:$0xff]
  %v126 = vld [vmem:[%s77 + $0x8] sm:$0xff]
  %v127 = vld [vmem:[%s77 + $0x10] sm:$0xff]
  %v128 = vld [vmem:[%s77 + $0x18] sm:$0xff]
  %v129 = vld [vmem:[%s77 + $0x20] sm:$0xff]
  %v130 = vld [vmem:[%s77 + $0x28] sm:$0xff]
  %v131 = vld [vmem:[%s77 + $0x30] sm:$0xff]
  %v132 = vld [vmem:[%s77 + $0x38] sm:$0xff]
  %v133 = vld [vmem:[%s77 + $0x40] sm:$0xff]
  %v134 = vld [vmem:[%s77 + $0x48] sm:$0xff]
  %v135 = vld [vmem:[%s77 + $0x50] sm:$0xff]
  %v136 = vld [vmem:[%s77 + $0x58] sm:$0xff]
  %v137 = vld [vmem:[%s77 + $0x60] sm:$0xff]
  %v138 = vld [vmem:[%s77 + $0x68] sm:$0xff]
  %v139 = vld [vmem:[%s77 + $0x70] sm:$0xff]
  %v140 = vld [vmem:[%s77 + $0x78] sm:$0xff]
  %v141 = vld [vmem:[%s86] sm:$0xff]
  %v142 = vld [vmem:[%s86 + $0x8] sm:$0xff]
  %v143 = vld [vmem:[%s86 + $0x10] sm:$0xff]
  %v144 = vld [vmem:[%s86 + $0x18] sm:$0xff]
  %v145 = vld [vmem:[%s86 + $0x20] sm:$0xff]
  %v146 = vld [vmem:[%s86 + $0x28] sm:$0xff]
  %v147 = vld [vmem:[%s86 + $0x30] sm:$0xff]
  %v148 = vld [vmem:[%s86 + $0x38] sm:$0xff]
  %v149 = vld [vmem:[%s86 + $0x40] sm:$0xff]
  %v150 = vld [vmem:[%s86 + $0x48] sm:$0xff]
  %v151 = vld [vmem:[%s86 + $0x50] sm:$0xff]
  %v152 = vld [vmem:[%s86 + $0x58] sm:$0xff]
  %v153 = vld [vmem:[%s86 + $0x60] sm:$0xff]
  %v154 = vld [vmem:[%s86 + $0x68] sm:$0xff]
  %v155 = vld [vmem:[%s86 + $0x70] sm:$0xff]
  %v156 = vld [vmem:[%s86 + $0x78] sm:$0xff]
  %v157 = vsub.f32 %v141, %v109
  %v158 = vsub.f32 %v142, %v110
  %v159 = vsub.f32 %v143, %v111
  %v160 = vsub.f32 %v144, %v112
  %v161 = vsub.f32 %v145, %v113
  %v162 = vsub.f32 %v146, %v114
  %v163 = vsub.f32 %v147, %v115
  %v164 = vsub.f32 %v148, %v116
  %v165 = vsub.f32 %v149, %v117
  %v166 = vsub.f32 %v150, %v118
  %v167 = vsub.f32 %v151, %v119
  %v168 = vsub.f32 %v152, %v120
  %v169 = vsub.f32 %v153, %v121
  %v170 = vsub.f32 %v154, %v122
  %v171 = vsub.f32 %v155, %v123
  %v172 = vsub.f32 %v156, %v124
  %v173 = vand.u32 2147483647, %v157
  %v174 = vand.u32 2147483647, %v158
  %v175 = vand.u32 2147483647, %v159
  %v176 = vand.u32 2147483647, %v160
  %v177 = vand.u32 2147483647, %v161
  %v178 = vand.u32 2147483647, %v162
  %v179 = vand.u32 2147483647, %v163
  %v180 = vand.u32 2147483647, %v164
  %v181 = vand.u32 2147483647, %v165
  %v182 = vand.u32 2147483647, %v166
  %v183 = vand.u32 2147483647, %v167
  %v184 = vand.u32 2147483647, %v168
  %v185 = vand.u32 2147483647, %v169
  %v186 = vand.u32 2147483647, %v170
  %v187 = vand.u32 2147483647, %v171
  %v188 = vand.u32 2147483647, %v172
  %v189 = vrcp.pop %v125
  %v190 = vmul.f32 %v173, %v189
  %v191 = vrcp.pop %v126
  %v192 = vmul.f32 %v174, %v191
  %v193 = vrcp.pop %v127
  %v194 = vmul.f32 %v175, %v193
  %v195 = vrcp.pop %v128
  %v196 = vmul.f32 %v176, %v195
  %v197 = vrcp.pop %v129
  %v198 = vmul.f32 %v177, %v197
  %v199 = vrcp.pop %v130
  %v200 = vmul.f32 %v178, %v199
  %v201 = vrcp.pop %v131
  %v202 = vmul.f32 %v179, %v201
  %v203 = vrcp.pop %v132
  %v204 = vmul.f32 %v180, %v203
  %v205 = vrcp.pop %v133
  %v206 = vmul.f32 %v181, %v205
  %v207 = vrcp.pop %v134
  %v208 = vmul.f32 %v182, %v207
  %v209 = vrcp.pop %v135
  %v210 = vmul.f32 %v183, %v209
  %v211 = vrcp.pop %v136
  %v212 = vmul.f32 %v184, %v211
  %v213 = vrcp.pop %v137
  %v214 = vmul.f32 %v185, %v213
  %v215 = vrcp.pop %v138
  %v216 = vmul.f32 %v186, %v215
  %v217 = vrcp.pop %v139
  %v218 = vmul.f32 %v187, %v217
  %v219 = vrcp.pop %v140
  %v220 = vmul.f32 %v188, %v219
  %v221 = vld [vmem:[#allocation2] sm:$0xff]
  %v222 = vld [vmem:[#allocation2 + $0x8] sm:$0xff]
  %v223 = vld [vmem:[#allocation2 + $0x10] sm:$0xff]
  %v224 = vld [vmem:[#allocation2 + $0x18] sm:$0xff]
  %v225 = vld [vmem:[#allocation2 + $0x20] sm:$0xff]
  %v226 = vld [vmem:[#allocation2 + $0x28] sm:$0xff]
  %v227 = vld [vmem:[#allocation2 + $0x30] sm:$0xff]
  %v228 = vld [vmem:[#allocation2 + $0x38] sm:$0xff]
  %v229 = vld [vmem:[#allocation2 + $0x40] sm:$0xff]
  %v230 = vld [vmem:[#allocation2 + $0x48] sm:$0xff]
  %v231 = vld [vmem:[#allocation2 + $0x50] sm:$0xff]
  %v232 = vld [vmem:[#allocation2 + $0x58] sm:$0xff]
  %v233 = vld [vmem:[#allocation2 + $0x60] sm:$0xff]
  %v234 = vld [vmem:[#allocation2 + $0x68] sm:$0xff]
  %v235 = vld [vmem:[#allocation2 + $0x70] sm:$0xff]
  %v236 = vld [vmem:[#allocation2 + $0x78] sm:$0xff]
  %v237 = vlog2.pop %v125
  %v238 = vmul.f32 %v237, 0.6931472
  %v239 = vlog2.pop %v126
  %v240 = vmul.f32 %v239, 0.6931472
  %v241 = vlog2.pop %v127
  %v242 = vmul.f32 %v241, 0.6931472
  %v243 = vlog2.pop %v128
  %v244 = vmul.f32 %v243, 0.6931472
  %v245 = vlog2.pop %v129
  %v246 = vmul.f32 %v245, 0.6931472
  %v247 = vlog2.pop %v130
  %v248 = vmul.f32 %v247, 0.6931472
  %v249 = vlog2.pop %v131
  %v250 = vmul.f32 %v249, 0.6931472
  %v251 = vlog2.pop %v132
  %v252 = vmul.f32 %v251, 0.6931472
  %v253 = vlog2.pop %v133
  %v254 = vmul.f32 %v253, 0.6931472
  %v255 = vlog2.pop %v134
  %v256 = vmul.f32 %v255, 0.6931472
  %v257 = vlog2.pop %v135
  %v258 = vmul.f32 %v257, 0.6931472
  %v259 = vlog2.pop %v136
  %v260 = vmul.f32 %v259, 0.6931472
  %v261 = vlog2.pop %v137
  %v262 = vmul.f32 %v261, 0.6931472
  %v263 = vlog2.pop %v138
  %v264 = vmul.f32 %v263, 0.6931472
  %v265 = vlog2.pop %v139
  %v266 = vmul.f32 %v265, 0.6931472
  %v267 = vlog2.pop %v140
  %v268 = vmul.f32 %v267, 0.6931472
  %v269 = vadd.f32 %v190, %v238
  %v270 = vadd.f32 %v192, %v240
  %v271 = vadd.f32 %v194, %v242
  %v272 = vadd.f32 %v196, %v244
  %v273 = vadd.f32 %v198, %v246
  %v274 = vadd.f32 %v200, %v248
  %v275 = vadd.f32 %v202, %v250
  %v276 = vadd.f32 %v204, %v252
  %v277 = vadd.f32 %v206, %v254
  %v278 = vadd.f32 %v208, %v256
  %v279 = vadd.f32 %v210, %v258
  %v280 = vadd.f32 %v212, %v260
  %v281 = vadd.f32 %v214, %v262
  %v282 = vadd.f32 %v216, %v264
  %v283 = vadd.f32 %v218, %v266
  %v284 = vadd.f32 %v220, %v268
  %v285 = vadd.f32 %v221, %v269
  %v286 = vadd.f32 %v222, %v270
  %v287 = vadd.f32 %v223, %v271
  %v288 = vadd.f32 %v224, %v272
  %v289 = vadd.f32 %v225, %v273
  %v290 = vadd.f32 %v226, %v274
  %v291 = vadd.f32 %v227, %v275
  %v292 = vadd.f32 %v228, %v276
  %v293 = vadd.f32 %v229, %v277
  %v294 = vadd.f32 %v230, %v278
  %v295 = vadd.f32 %v231, %v279
  %v296 = vadd.f32 %v232, %v280
  %v297 = vadd.f32 %v233, %v281
  %v298 = vadd.f32 %v234, %v282
  %v299 = vadd.f32 %v235, %v283
  %v300 = vadd.f32 %v236, %v284
  %301 = vst [vmem:[#allocation2] sm:$0xff] %v285
  %302 = vst [vmem:[#allocation2 + $0x8] sm:$0xff] %v286
  %303 = vst [vmem:[#allocation2 + $0x10] sm:$0xff] %v287
  %304 = vst [vmem:[#allocation2 + $0x18] sm:$0xff] %v288
  %305 = vst [vmem:[#allocation2 + $0x20] sm:$0xff] %v289
  %306 = vst [vmem:[#allocation2 + $0x28] sm:$0xff] %v290
  %307 = vst [vmem:[#allocation2 + $0x30] sm:$0xff] %v291
  %308 = vst [vmem:[#allocation2 + $0x38] sm:$0xff] %v292
  %309 = vst [vmem:[#allocation2 + $0x40] sm:$0xff] %v293
  %310 = vst [vmem:[#allocation2 + $0x48] sm:$0xff] %v294
  %311 = vst [vmem:[#allocation2 + $0x50] sm:$0xff] %v295
  %312 = vst [vmem:[#allocation2 + $0x58] sm:$0xff] %v296
  %313 = vst [vmem:[#allocation2 + $0x60] sm:$0xff] %v297
  %314 = vst [vmem:[#allocation2 + $0x68] sm:$0xff] %v298
  %315 = vst [vmem:[#allocation2 + $0x70] sm:$0xff] %v299
  %316 = vst [vmem:[#allocation2 + $0x78] sm:$0xff] %v300
  // Predicated region
  $region18: #{laplace_loss.1} parent=0 // pred_check
    %p317 = pneg %p89
  $region19: #{laplace_loss.1} parent=0 // pred_check_branch
    %319 = sbr.rel (%p317) target = $region21
  $region20: #{laplace_loss.1} parent=0 // pred_region
    %v320 = vld [vmem:[#allocation2] sm:$0xff]
    %v321 = vld [vmem:[#allocation2 + $0x8] sm:$0xff]
    %v322 = vld [vmem:[#allocation2 + $0x10] sm:$0xff]
    %v323 = vld [vmem:[#allocation2 + $0x18] sm:$0xff]
    %v324 = vld [vmem:[#allocation2 + $0x20] sm:$0xff]
    %v325 = vld [vmem:[#allocation2 + $0x28] sm:$0xff]
    %v326 = vld [vmem:[#allocation2 + $0x30] sm:$0xff]
    %v327 = vld [vmem:[#allocation2 + $0x38] sm:$0xff]
    %v328 = vld [vmem:[#allocation2 + $0x40] sm:$0xff]
    %v329 = vld [vmem:[#allocation2 + $0x48] sm:$0xff]
    %v330 = vld [vmem:[#allocation2 + $0x50] sm:$0xff]
    %v331 = vld [vmem:[#allocation2 + $0x58] sm:$0xff]
    %v332 = vld [vmem:[#allocation2 + $0x60] sm:$0xff]
    %v333 = vld [vmem:[#allocation2 + $0x68] sm:$0xff]
    %v334 = vld [vmem:[#allocation2 + $0x70] sm:$0xff]
    %v335 = vld [vmem:[#allocation2 + $0x78] sm:$0xff]
    %v336 = vadd.f32 %v320, %v321
    %v337 = vadd.f32 %v336, %v322
    %v338 = vadd.f32 %v337, %v323
    %v339 = vadd.f32 %v338, %v324
    %v340 = vadd.f32 %v339, %v325
    %v341 = vadd.f32 %v340, %v326
    %v342 = vadd.f32 %v341, %v327
    %v343 = vadd.f32 %v342, %v328
    %v344 = vadd.f32 %v343, %v329
    %v345 = vadd.f32 %v344, %v330
    %v346 = vadd.f32 %v345, %v331
    %v347 = vadd.f32 %v346, %v332
    %v348 = vadd.f32 %v347, %v333
    %v349 = vadd.f32 %v348, %v334
    %v350 = vadd.f32 %v349, %v335
    %351 = vadd.xlane.f32.xlu0 %v350
    %v352 = vpop.xlane.xlu0 %351
    %v353 = vrot.slane %v352, 4
    %v354 = vadd.f32 %v352, %v353
    %v355 = vrot.slane %v354, 2
    %v356 = vadd.f32 %v354, %v355
    %v357 = vrot.slane %v356, 1
    %v358 = vadd.f32 %v356, %v357
    %s359 = vtos %v358
    %v360 = vstv %s359
    %361 = vst [vmem:[%s3] sm:$0xff] %v360
  $region21: #{laplace_loss.1} parent=0 // pred_fallthru
    _
  // Predicated region
  $region22: #{laplace_loss.1} parent=0 // pred_check
    _
  $region23: #{laplace_loss.1} parent=0 // pred_check_branch
    %363 = sbr.rel (0) target = $region25
  $region24: #{laplace_loss.1} parent=0 // pred_region
    _
  $region25: #{laplace_loss.1} parent=0 // pred_fallthru
    _
  // Predicated region
  $region26: #{laplace_loss.1} parent=0 // pred_check
    _
  $region27: #{laplace_loss.1} parent=0 // pred_check_branch
    %365 = sbr.rel (0) target = $region29
  $region28: #{laplace_loss.1} parent=0 // pred_region
    _
  $region29: #{laplace_loss.1} parent=0 // pred_fallthru
    _

</llo_original>
